<compile_context>
chip_gen: v6e
topology: v6e:2x2x1
jax: 0.10.0
libtpu: 0.0.40
codegen_flags: <defaults>
</compile_context>

<pallas_src>
import jax
import jax.numpy as jnp
from jax.experimental import pallas as pl
from jax.experimental.pallas import tpu as pltpu


def dp_kernel(uid_ref, iid_ref, su_ref, si_ref, o_ref):
    # uid_ref / iid_ref : (1, TB) int32 id blocks for this batch tile
    # su_ref            : (1, Vu_pad) f32 precomputed user scores (bias folded in)
    # si_ref            : (1, Vi_pad) f32 precomputed item scores
    # o_ref             : (1, TB) lane-dense output block
    Vu = su_ref.shape[1]
    Vi = si_ref.shape[1]
    TB = o_ref.shape[1]

    uids = uid_ref[...]  # (1, TB)
    iids = iid_ref[...]  # (1, TB)

    # One-hot selection matrices: onehot[v, t] = (v == ids[t]).
    u_onehot = (
        jax.lax.broadcasted_iota(jnp.int32, (Vu, TB), 0) == uids
    ).astype(jnp.float32)  # (Vu, TB)
    i_onehot = (
        jax.lax.broadcasted_iota(jnp.int32, (Vi, TB), 0) == iids
    ).astype(jnp.float32)  # (Vi, TB)

    # Gather-as-matmul on the otherwise-idle MXU:
    #   contrib[0, t] = scores[ids[t]]
    contrib_u = jnp.dot(su_ref[...], u_onehot, preferred_element_type=jnp.float32)
    contrib_i = jnp.dot(si_ref[...], i_onehot, preferred_element_type=jnp.float32)

    # Dropout: nn.Dropout is identity in eval mode -> no-op.
    o_ref[...] = contrib_u + contrib_i


def core_dp_forward(user_ids, item_ids, user_table, item_table, w, b, *, max_tb=1024):
    """user_ids/item_ids: int (B,); tables: (V, E) f32; w: (2E, 1); b: (1,)."""
    B = user_ids.shape[0]
    Vu, E = user_table.shape
    Vi, E2 = item_table.shape
    assert E2 == E
    assert w.shape[0] == 2 * E

    # ---- Precompute per-row fc scores once with XLA (review opt #1, #8). ----
    # out[t] = (user_table @ w_u + b)[uid[t]] + (item_table @ w_v)[iid[t]]
    w_u = w[:E, 0].astype(jnp.float32)  # (E,)
    w_v = w[E:, 0].astype(jnp.float32)  # (E,)
    scores_u = user_table.astype(jnp.float32) @ w_u + b.astype(jnp.float32).reshape(())
    scores_i = item_table.astype(jnp.float32) @ w_v

    # Pad the score rows to lane multiples (>=128) so they are lane-dense.
    # Padded rows are never selected because valid ids are < V <= V_pad.
    Vu_pad = ((Vu + 127) // 128) * 128
    Vi_pad = ((Vi + 127) // 128) * 128
    su = jnp.zeros((1, Vu_pad), jnp.float32).at[0, :Vu].set(scores_u)
    si = jnp.zeros((1, Vi_pad), jnp.float32).at[0, :Vi].set(scores_i)

    # Batch tile: multiple of 128 for lane-dense stores, up to max_tb rows.
    TB = min(max_tb, ((B + 127) // 128) * 128)
    B_pad = ((B + TB - 1) // TB) * TB
    grid = (B_pad // TB,)

    uids = jnp.zeros((1, B_pad), jnp.int32).at[0, :B].set(user_ids.astype(jnp.int32))
    iids = jnp.zeros((1, B_pad), jnp.int32).at[0, :B].set(item_ids.astype(jnp.int32))

    out = pl.pallas_call(
        dp_kernel,
        out_shape=jax.ShapeDtypeStruct((1, B_pad), jnp.float32),
        grid=grid,
        in_specs=[
            # id blocks for this batch tile
            pl.BlockSpec((1, TB), lambda g: (0, g)),
            pl.BlockSpec((1, TB), lambda g: (0, g)),
            # precomputed score rows, grid-invariant (constant index_map)
            pl.BlockSpec((1, Vu_pad), lambda g: (0, 0)),
            pl.BlockSpec((1, Vi_pad), lambda g: (0, 0)),
        ],
        out_specs=pl.BlockSpec((1, TB), lambda g: (0, g)),
        compiler_params=pltpu.CompilerParams(
            dimension_semantics=("parallel",),
        ),
    )(uids, iids, su, si)

    return out[0, :B]  # .squeeze()


def _reference(user_ids, item_ids, user_table, item_table, w, b):
    ue = user_table[user_ids]
    ie = item_table[item_ids]
    x = jnp.concatenate([ue, ie], axis=1)
    return (x @ w).reshape(-1) + b.reshape(())


if __name__ == "__main__":
    key = jax.random.PRNGKey(0)
    k_u, k_i, k_w, k_b, k_uid, k_iid = jax.random.split(key, 6)

    num_users, num_items, E, B = 12, 20, 32, 8

    user_table = jax.random.normal(k_u, (num_users, E), dtype=jnp.float32)
    item_table = jax.random.normal(k_i, (num_items, E), dtype=jnp.float32)
    # fc = nn.Linear(2E, 1): weight (1, 2E), bias (1,) -> stored transposed (2E, 1)
    w = jax.random.normal(k_w, (2 * E, 1), dtype=jnp.float32) * 0.1
    b = jax.random.normal(k_b, (1,), dtype=jnp.float32)

    user_ids = jax.random.randint(k_uid, (B,), 0, num_users, dtype=jnp.int32)
    item_ids = jax.random.randint(k_iid, (B,), 0, num_items, dtype=jnp.int32)

    out = core_dp_forward(user_ids, item_ids, user_table, item_table, w, b)
    out = jax.block_until_ready(out)

    ref = _reference(user_ids, item_ids, user_table, item_table, w, b)
    assert out.shape == (B,), out.shape
    assert jnp.allclose(out, ref, atol=1e-5, rtol=1e-5), (out, ref)

    print("KERNEL_OK")
</pallas_src>

<mosaic_0001>
module attributes {stable_mosaic.version = 11 : i64} {
  func.func @dp_kernel(%arg0: i32, %arg1: memref<1x128xi32, #tpu.memory_space<vmem>>, %arg2: memref<1x128xi32, #tpu.memory_space<vmem>>, %arg3: memref<1x128xf32, #tpu.memory_space<vmem>>, %arg4: memref<1x128xf32, #tpu.memory_space<vmem>>, %arg5: memref<1x128xf32, #tpu.memory_space<vmem>>) attributes {dimension_semantics = [#tpu.dimension_semantics<parallel>], iteration_bounds = array<i64: 1>, scalar_prefetch = 0 : i64, scratch_operands = 0 : i64, tpu.core_type = #tpu.core_type<tc>, window_params = [{transform_indices = @transform_0, window_bounds = array<i64: 1, 128>}, {transform_indices = @transform_1, window_bounds = array<i64: 1, 128>}, {pipeline_mode = #tpu.pipeline_mode<synchronous>, transform_indices = @transform_2, window_bounds = array<i64: 1, 128>}, {pipeline_mode = #tpu.pipeline_mode<synchronous>, transform_indices = @transform_3, window_bounds = array<i64: 1, 128>}, {transform_indices = @transform_4, window_bounds = array<i64: 1, 128>}]} {
    %c0 = arith.constant 0 : index
    %c0_0 = arith.constant 0 : index
    %0 = vector.load %arg1[%c0, %c0_0] : memref<1x128xi32, #tpu.memory_space<vmem>>, vector<1x128xi32>
    %c0_1 = arith.constant 0 : index
    %c0_2 = arith.constant 0 : index
    %1 = vector.load %arg2[%c0_1, %c0_2] : memref<1x128xi32, #tpu.memory_space<vmem>>, vector<1x128xi32>
    %2 = tpu.iota {dimensions = array<i32: 0>} : vector<128x128xi32>
    %3 = vector.broadcast %0 : vector<1x128xi32> to vector<128x128xi32>
    %4 = arith.cmpi eq, %2, %3 : vector<128x128xi32>
    %5 = arith.extui %4 : vector<128x128xi1> to vector<128x128xi32>
    %6 = arith.sitofp %5 : vector<128x128xi32> to vector<128x128xf32>
    %7 = tpu.iota {dimensions = array<i32: 0>} : vector<128x128xi32>
    %8 = vector.broadcast %1 : vector<1x128xi32> to vector<128x128xi32>
    %9 = arith.cmpi eq, %7, %8 : vector<128x128xi32>
    %10 = arith.extui %9 : vector<128x128xi1> to vector<128x128xi32>
    %11 = arith.sitofp %10 : vector<128x128xi32> to vector<128x128xf32>
    %c0_3 = arith.constant 0 : index
    %c0_4 = arith.constant 0 : index
    %12 = vector.load %arg3[%c0_3, %c0_4] : memref<1x128xf32, #tpu.memory_space<vmem>>, vector<1x128xf32>
    %cst = arith.constant dense<0.000000e+00> : vector<1x128xf32>
    %13 = tpu.matmul %12, %6, %cst {dimension_numbers = #tpu.dot_dimension_numbers<[1], [0], [0], [1], [0, 0, 1, 1], [], []>} : vector<1x128xf32>, vector<128x128xf32>, vector<1x128xf32> -> vector<1x128xf32>
    %c0_5 = arith.constant 0 : index
    %c0_6 = arith.constant 0 : index
    %14 = vector.load %arg4[%c0_5, %c0_6] : memref<1x128xf32, #tpu.memory_space<vmem>>, vector<1x128xf32>
    %cst_7 = arith.constant dense<0.000000e+00> : vector<1x128xf32>
    %15 = tpu.matmul %14, %11, %cst_7 {dimension_numbers = #tpu.dot_dimension_numbers<[1], [0], [0], [1], [0, 0, 1, 1], [], []>} : vector<1x128xf32>, vector<128x128xf32>, vector<1x128xf32> -> vector<1x128xf32>
    %16 = arith.addf %13, %15 : vector<1x128xf32>
    %c0_8 = arith.constant 0 : index
    %c0_9 = arith.constant 0 : index
    %17 = vector.load %arg5[%c0_8, %c0_9] : memref<1x128xf32, #tpu.memory_space<vmem>>, vector<1x128xf32>
    tpu.vector_store %arg5[%c0_8, %c0_9], %16 {strides = array<i32>} : memref<1x128xf32, #tpu.memory_space<vmem>>, vector<1x128xf32>,
    return
  }
  func.func @transform_0(%arg0: i32) -> (i32, i32) {
    %c0_i32 = arith.constant 0 : i32
    %c0_i32_0 = arith.constant 0 : i32
    return %c0_i32, %arg0 : i32, i32
  }
  func.func @transform_1(%arg0: i32) -> (i32, i32) {
    %c0_i32 = arith.constant 0 : i32
    %c0_i32_0 = arith.constant 0 : i32
    return %c0_i32, %arg0 : i32, i32
  }
  func.func @transform_2(%arg0: i32) -> (i32, i32) {
    %c0_i32 = arith.constant 0 : i32
    %c0_i32_0 = arith.constant 0 : i32
    %c0_i32_1 = arith.constant 0 : i32
    return %c0_i32, %c0_i32_0 : i32, i32
  }
  func.func @transform_3(%arg0: i32) -> (i32, i32) {
    %c0_i32 = arith.constant 0 : i32
    %c0_i32_0 = arith.constant 0 : i32
    %c0_i32_1 = arith.constant 0 : i32
    return %c0_i32, %c0_i32_0 : i32, i32
  }
  func.func @transform_4(%arg0: i32) -> (i32, i32) {
    %c0_i32 = arith.constant 0 : i32
    %c0_i32_0 = arith.constant 0 : i32
    return %c0_i32, %arg0 : i32, i32
  }
}

</mosaic_0001>

<llo_original>
// kernel: tpu_custom_call.1
$region0: #{tpu_custom_call.1}
  #allocation0 [shape = 'u32[]', space=smem, size = 0x4, offset = 0x4, fixed_abs, tag = 'smem constant byte address 0x4 - core index']
  #allocation1 [shape = 'u32[144,128]{1,0:T(1,128)}', space=vmem, size = 0x12000, scoped, tag = 'internal scratch']
  %s0 = inlined_call_operand.hbm [shape: s32[1,128], index: 0, kind: input, shape index: {}]
  %s1 = inlined_call_operand.vmem [shape: s32[1,128], index: 1, kind: input, shape index: {}]
  %s2 = inlined_call_operand.vmem [shape: f32[1,128], index: 2, kind: input, shape index: {}]
  %s3 = inlined_call_operand.vmem [shape: f32[1,128], index: 3, kind: input, shape index: {}]
  %s4 = inlined_call_operand.hbm [shape: f32[1,128], index: 4, kind: output, shape index: {}]
  %s5 = sld [smem:[#allocation0]]
  $region30: #{tpu_custom_call.1} parent=0
    _
  %s7 = ssub.s32 1, %s5
  %s8 = scalar_select 0, %s7, %s5
  $region1: #{tpu_custom_call.1} parent=0
    #allocation2 [shape = 'u8[512]{0}', space=vmem, size = 0x400, scoped, tag = 'input window, operand 0, single buffered']
    #allocation3 [shape = 's32[1]{0}', space=sflag, size = 0x4, scoped, tag = 'scoped memory for tpu_custom_call.1']
    #allocation4 [shape = 's32[1]{0}', space=sflag, size = 0x4, scoped, tag = 'scoped memory for tpu_custom_call.1']
    #allocation5 [shape = 'u8[512]{0}', space=vmem, size = 0x400, scoped, tag = 'output window, operand 0, single buffered']
    %9 = vsyncpa [#allocation3], 0
    %10 = vsyncpa [#allocation4], 0
    // Predicated region
    $region2: #{tpu_custom_call.1} parent=1 // pred_check
      _
    $region3: #{tpu_custom_call.1} parent=1 // pred_check_branch
      %12 = sbr.rel (0) target = $region5
    $region4: #{tpu_custom_call.1} parent=1 // pred_region
      %s14 = ssub.s32 16, 16
      %15 = vsyncadd [#allocation3], %s14
      %s17 = sshll.u32 [#allocation2], 4
      %s18 = int_to_ptr.vmem [resolvable:$true] %s17
      %20 = dma.hbm_to_vmem [thread:$0]  %s0, 16, %s18, [#allocation3]
    $region5: #{tpu_custom_call.1} parent=1 // pred_fallthru
      _
    // Predicated region
    $region6: #{tpu_custom_call.1} parent=1 // pred_check
      _
    $region7: #{tpu_custom_call.1} parent=1 // pred_check_branch
      %22 = sbr.rel (0) target = $region9
    $region8: #{tpu_custom_call.1} parent=1 // pred_region
      _
    $region9: #{tpu_custom_call.1} parent=1 // pred_fallthru
      _
    // Predicated region
    $region10: #{tpu_custom_call.1} parent=1 // pred_check
      _
    $region11: #{tpu_custom_call.1} parent=1 // pred_check_branch
      %24 = sbr.rel (0) target = $region13
    $region12: #{tpu_custom_call.1} parent=1 // pred_region
      _
    $region13: #{tpu_custom_call.1} parent=1 // pred_fallthru
      _
    // Predicated region
    $region14: #{tpu_custom_call.1} parent=1 // pred_check
      _
    $region15: #{tpu_custom_call.1} parent=1 // pred_check_branch
      %26 = sbr.rel (0) target = $region17
    $region16: #{tpu_custom_call.1} parent=1 // pred_region
      _
    $region17: #{tpu_custom_call.1} parent=1 // pred_fallthru
      _
    // Predicated region
    $region18: #{tpu_custom_call.1} parent=1 // pred_check
      _
    $region19: #{tpu_custom_call.1} parent=1 // pred_check_branch
      %28 = sbr.rel (0) target = $region21
    $region20: #{tpu_custom_call.1} parent=1 // pred_region
      %29 = dma.done [#allocation3], 16
    $region21: #{tpu_custom_call.1} parent=1 // pred_fallthru
      _
    %v30 = vld [vmem:[#allocation2] sm:$0x1]
    %v31 = vld [vmem:[%s1] sm:$0x1]
    %v32 = vlaneseq
    %v33 = vshrl.u32 %v32, 7
    %v34 = vadd.s32 %v33, 8
    %v35 = vadd.s32 %v33, 16
    %v36 = vadd.s32 %v33, 24
    %v37 = vadd.s32 %v33, 32
    %v38 = vadd.s32 %v33, 40
    %v39 = vadd.s32 %v33, 48
    %v40 = vadd.s32 %v33, 56
    %v41 = vadd.s32 %v33, 64
    %v42 = vadd.s32 %v33, 72
    %v43 = vadd.s32 %v33, 80
    %v44 = vadd.s32 %v33, 88
    %v45 = vadd.s32 %v33, 96
    %v46 = vadd.s32 %v33, 104
    %v47 = vadd.s32 %v33, 112
    %v48 = vadd.s32 %v33, 120
    %v49 = vlaneseq
    %v50 = vshrl.u32 %v49, 7
    %v51 = vsub.s32 0, %v50
    %v52 = vrot.slane %v30, %v51
    %vm53 = vcmp.eq.s32.totalorder %v33, %v52
    %vm54 = vcmp.eq.s32.totalorder %v34, %v52
    %vm55 = vcmp.eq.s32.totalorder %v35, %v52
    %vm56 = vcmp.eq.s32.totalorder %v36, %v52
    %vm57 = vcmp.eq.s32.totalorder %v37, %v52
    %vm58 = vcmp.eq.s32.totalorder %v38, %v52
    %vm59 = vcmp.eq.s32.totalorder %v39, %v52
    %vm60 = vcmp.eq.s32.totalorder %v40, %v52
    %vm61 = vcmp.eq.s32.totalorder %v41, %v52
    %vm62 = vcmp.eq.s32.totalorder %v42, %v52
    %vm63 = vcmp.eq.s32.totalorder %v43, %v52
    %vm64 = vcmp.eq.s32.totalorder %v44, %v52
    %vm65 = vcmp.eq.s32.totalorder %v45, %v52
    %vm66 = vcmp.eq.s32.totalorder %v46, %v52
    %vm67 = vcmp.eq.s32.totalorder %v47, %v52
    %vm68 = vcmp.eq.s32.totalorder %v48, %v52
    %v69 = vsel %vm53, 1, 0
    %v70 = vsel %vm54, 1, 0
    %v71 = vsel %vm55, 1, 0
    %v72 = vsel %vm56, 1, 0
    %v73 = vsel %vm57, 1, 0
    %v74 = vsel %vm58, 1, 0
    %v75 = vsel %vm59, 1, 0
    %v76 = vsel %vm60, 1, 0
    %v77 = vsel %vm61, 1, 0
    %v78 = vsel %vm62, 1, 0
    %v79 = vsel %vm63, 1, 0
    %v80 = vsel %vm64, 1, 0
    %v81 = vsel %vm65, 1, 0
    %v82 = vsel %vm66, 1, 0
    %v83 = vsel %vm67, 1, 0
    %v84 = vsel %vm68, 1, 0
    %v85 = vcvt.s32.f32 %v69
    %v86 = vcvt.s32.f32 %v70
    %v87 = vcvt.s32.f32 %v71
    %v88 = vcvt.s32.f32 %v72
    %v89 = vcvt.s32.f32 %v73
    %v90 = vcvt.s32.f32 %v74
    %v91 = vcvt.s32.f32 %v75
    %v92 = vcvt.s32.f32 %v76
    %v93 = vcvt.s32.f32 %v77
    %v94 = vcvt.s32.f32 %v78
    %v95 = vcvt.s32.f32 %v79
    %v96 = vcvt.s32.f32 %v80
    %v97 = vcvt.s32.f32 %v81
    %v98 = vcvt.s32.f32 %v82
    %v99 = vcvt.s32.f32 %v83
    %v100 = vcvt.s32.f32 %v84
    %v101 = vlaneseq
    %v102 = vshrl.u32 %v101, 7
    %v103 = vsub.s32 0, %v102
    %v104 = vrot.slane %v31, %v103
    %vm105 = vcmp.eq.s32.totalorder %v33, %v104
    %vm106 = vcmp.eq.s32.totalorder %v34, %v104
    %vm107 = vcmp.eq.s32.totalorder %v35, %v104
    %vm108 = vcmp.eq.s32.totalorder %v36, %v104
    %vm109 = vcmp.eq.s32.totalorder %v37, %v104
    %vm110 = vcmp.eq.s32.totalorder %v38, %v104
    %vm111 = vcmp.eq.s32.totalorder %v39, %v104
    %vm112 = vcmp.eq.s32.totalorder %v40, %v104
    %vm113 = vcmp.eq.s32.totalorder %v41, %v104
    %vm114 = vcmp.eq.s32.totalorder %v42, %v104
    %vm115 = vcmp.eq.s32.totalorder %v43, %v104
    %vm116 = vcmp.eq.s32.totalorder %v44, %v104
    %vm117 = vcmp.eq.s32.totalorder %v45, %v104
    %vm118 = vcmp.eq.s32.totalorder %v46, %v104
    %vm119 = vcmp.eq.s32.totalorder %v47, %v104
    %vm120 = vcmp.eq.s32.totalorder %v48, %v104
    %v121 = vsel %vm105, 1, 0
    %v122 = vsel %vm106, 1, 0
    %v123 = vsel %vm107, 1, 0
    %v124 = vsel %vm108, 1, 0
    %v125 = vsel %vm109, 1, 0
    %v126 = vsel %vm110, 1, 0
    %v127 = vsel %vm111, 1, 0
    %v128 = vsel %vm112, 1, 0
    %v129 = vsel %vm113, 1, 0
    %v130 = vsel %vm114, 1, 0
    %v131 = vsel %vm115, 1, 0
    %v132 = vsel %vm116, 1, 0
    %v133 = vsel %vm117, 1, 0
    %v134 = vsel %vm118, 1, 0
    %v135 = vsel %vm119, 1, 0
    %v136 = vsel %vm120, 1, 0
    %v137 = vcvt.s32.f32 %v121
    %v138 = vcvt.s32.f32 %v122
    %v139 = vcvt.s32.f32 %v123
    %v140 = vcvt.s32.f32 %v124
    %v141 = vcvt.s32.f32 %v125
    %v142 = vcvt.s32.f32 %v126
    %v143 = vcvt.s32.f32 %v127
    %v144 = vcvt.s32.f32 %v128
    %v145 = vcvt.s32.f32 %v129
    %v146 = vcvt.s32.f32 %v130
    %v147 = vcvt.s32.f32 %v131
    %v148 = vcvt.s32.f32 %v132
    %v149 = vcvt.s32.f32 %v133
    %v150 = vcvt.s32.f32 %v134
    %v151 = vcvt.s32.f32 %v135
    %v152 = vcvt.s32.f32 %v136
    %v153 = vld [vmem:[%s2] sm:$0x1]
    %v154 = vld [vmem:[%s3] sm:$0x1]
    %155 = vmatprep.subr.mxu0 0.0
    %156 = vmatpush1.msra.mxu0 %v152
    %157 = vmatprep.subr.mxu0 0.0
    %158 = vmatpush1.msra.mxu0 %v151
    %159 = vmatprep.subr.mxu0 0.0
    %160 = vmatpush1.msra.mxu0 %v150
    %161 = vmatprep.subr.mxu0 0.0
    %162 = vmatpush1.msra.mxu0 %v149
    %163 = vmatprep.subr.mxu0 0.0
    %164 = vmatpush1.msra.mxu0 %v148
    %165 = vmatprep.subr.mxu0 0.0
    %166 = vmatpush1.msra.mxu0 %v147
    %167 = vmatprep.subr.mxu0 0.0
    %168 = vmatpush1.msra.mxu0 %v146
    %169 = vmatprep.subr.mxu0 0.0
    %170 = vmatpush1.msra.mxu0 %v145
    %171 = vmatprep.subr.mxu0 0.0
    %172 = vmatpush1.msra.mxu0 %v144
    %173 = vmatprep.subr.mxu0 0.0
    %174 = vmatpush1.msra.mxu0 %v143
    %175 = vmatprep.subr.mxu0 0.0
    %176 = vmatpush1.msra.mxu0 %v142
    %177 = vmatprep.subr.mxu0 0.0
    %178 = vmatpush1.msra.mxu0 %v141
    %179 = vmatprep.subr.mxu0 0.0
    %180 = vmatpush1.msra.mxu0 %v140
    %181 = vmatprep.subr.mxu0 0.0
    %182 = vmatpush1.msra.mxu0 %v139
    %183 = vmatprep.subr.mxu0 0.0
    %184 = vmatpush1.msra.mxu0 %v138
    %185 = vmatprep.subr.mxu0 0.0
    %186 = vmatpush1.msra.mxu0 %v137
    %187 = vmatprep.subr.mxu0 0.0
    %188 = vmatpush2.msra.mxu0 0.0
    %189 = vmatprep.subr.mxu0 0.0
    %190 = vmatpush2.msra.mxu0 0.0
    %191 = vmatprep.subr.mxu0 0.0
    %192 = vmatpush2.msra.mxu0 0.0
    %193 = vmatprep.subr.mxu0 0.0
    %194 = vmatpush2.msra.mxu0 0.0
    %195 = vmatprep.subr.mxu0 0.0
    %196 = vmatpush2.msra.mxu0 0.0
    %197 = vmatprep.subr.mxu0 0.0
    %198 = vmatpush2.msra.mxu0 0.0
    %199 = vmatprep.subr.mxu0 0.0
    %200 = vmatpush2.msra.mxu0 0.0
    %201 = vmatprep.subr.mxu0 0.0
    %202 = vmatpush2.msra.mxu0 0.0
    %203 = vmatprep.subr.mxu0 0.0
    %204 = vmatpush2.msra.mxu0 0.0
    %205 = vmatprep.subr.mxu0 0.0
    %206 = vmatpush2.msra.mxu0 0.0
    %207 = vmatprep.subr.mxu0 0.0
    %208 = vmatpush2.msra.mxu0 0.0
    %209 = vmatprep.subr.mxu0 0.0
    %210 = vmatpush2.msra.mxu0 0.0
    %211 = vmatprep.subr.mxu0 0.0
    %212 = vmatpush2.msra.mxu0 0.0
    %213 = vmatprep.subr.mxu0 0.0
    %214 = vmatpush2.msra.mxu0 0.0
    %215 = vmatprep.subr.mxu0 0.0
    %216 = vmatpush2.msra.mxu0 0.0
    %217 = vmatprep.subr.mxu0 0.0
    %218 = vmatpush2.msra.mxu0 0.0
    %219 = vmatprep.mubr.f32.mxu0 0.0
    %220 = vmatmul.mubr.f32.gmra.mxu0 %v154
    %v221 = vpop.f32.mrf.mxu0
    %v222 = vadd.f32 0.0, %v221
    %v223 = vpop.f32.mrf.mxu0
    %224 = vdwg.mxu0
    %225 = vmatprep.subr.mxu0 0.0
    %226 = vmatpush1.msra.mxu0 %v100
    %227 = vmatprep.subr.mxu0 0.0
    %228 = vmatpush1.msra.mxu0 %v99
    %229 = vmatprep.subr.mxu0 0.0
    %230 = vmatpush1.msra.mxu0 %v98
    %231 = vmatprep.subr.mxu0 0.0
    %232 = vmatpush1.msra.mxu0 %v97
    %233 = vmatprep.subr.mxu0 0.0
    %234 = vmatpush1.msra.mxu0 %v96
    %235 = vmatprep.subr.mxu0 0.0
    %236 = vmatpush1.msra.mxu0 %v95
    %237 = vmatprep.subr.mxu0 0.0
    %238 = vmatpush1.msra.mxu0 %v94
    %239 = vmatprep.subr.mxu0 0.0
    %240 = vmatpush1.msra.mxu0 %v93
    %241 = vmatprep.subr.mxu0 0.0
    %242 = vmatpush1.msra.mxu0 %v92
    %243 = vmatprep.subr.mxu0 0.0
    %244 = vmatpush1.msra.mxu0 %v91
    %245 = vmatprep.subr.mxu0 0.0
    %246 = vmatpush1.msra.mxu0 %v90
    %247 = vmatprep.subr.mxu0 0.0
    %248 = vmatpush1.msra.mxu0 %v89
    %249 = vmatprep.subr.mxu0 0.0
    %250 = vmatpush1.msra.mxu0 %v88
    %251 = vmatprep.subr.mxu0 0.0
    %252 = vmatpush1.msra.mxu0 %v87
    %253 = vmatprep.subr.mxu0 0.0
    %254 = vmatpush1.msra.mxu0 %v86
    %255 = vmatprep.subr.mxu0 0.0
    %256 = vmatpush1.msra.mxu0 %v85
    %257 = vmatprep.subr.mxu0 0.0
    %258 = vmatpush2.msra.mxu0 0.0
    %259 = vmatprep.subr.mxu0 0.0
    %260 = vmatpush2.msra.mxu0 0.0
    %261 = vmatprep.subr.mxu0 0.0
    %262 = vmatpush2.msra.mxu0 0.0
    %263 = vmatprep.subr.mxu0 0.0
    %264 = vmatpush2.msra.mxu0 0.0
    %265 = vmatprep.subr.mxu0 0.0
    %266 = vmatpush2.msra.mxu0 0.0
    %267 = vmatprep.subr.mxu0 0.0
    %268 = vmatpush2.msra.mxu0 0.0
    %269 = vmatprep.subr.mxu0 0.0
    %270 = vmatpush2.msra.mxu0 0.0
    %271 = vmatprep.subr.mxu0 0.0
    %272 = vmatpush2.msra.mxu0 0.0
    %273 = vmatprep.subr.mxu0 0.0
    %274 = vmatpush2.msra.mxu0 0.0
    %275 = vmatprep.subr.mxu0 0.0
    %276 = vmatpush2.msra.mxu0 0.0
    %277 = vmatprep.subr.mxu0 0.0
    %278 = vmatpush2.msra.mxu0 0.0
    %279 = vmatprep.subr.mxu0 0.0
    %280 = vmatpush2.msra.mxu0 0.0
    %281 = vmatprep.subr.mxu0 0.0
    %282 = vmatpush2.msra.mxu0 0.0
    %283 = vmatprep.subr.mxu0 0.0
    %284 = vmatpush2.msra.mxu0 0.0
    %285 = vmatprep.subr.mxu0 0.0
    %286 = vmatpush2.msra.mxu0 0.0
    %287 = vmatprep.subr.mxu0 0.0
    %288 = vmatpush2.msra.mxu0 0.0
    %289 = vmatprep.mubr.f32.mxu0 0.0
    %290 = vmatmul.mubr.f32.gmra.mxu0 %v153
    %v291 = vpop.f32.mrf.mxu0
    %v292 = vadd.f32 %v222, %v291
    %v293 = vpop.f32.mrf.mxu0
    %294 = vdwg.mxu0
    %295 = vst [vmem:[#allocation5] sm:$0x1] %v292
    // Predicated region
    $region22: #{tpu_custom_call.1} parent=1 // pred_check
      _
    $region23: #{tpu_custom_call.1} parent=1 // pred_check_branch
      %297 = sbr.rel (0) target = $region25
    $region24: #{tpu_custom_call.1} parent=1 // pred_region
      %s299 = ssub.s32 16, 16
      %300 = vsyncadd [#allocation4], %s299
      %s302 = sshll.u32 [#allocation5], 4
      %s303 = int_to_ptr.vmem [resolvable:$true] %s302
      %305 = dma.vmem_to_hbm [thread:$0]  %s303, 16, %s4, [#allocation4]
    $region25: #{tpu_custom_call.1} parent=1 // pred_fallthru
      _
    // Predicated region
    $region26: #{tpu_custom_call.1} parent=1 // pred_check
      _
    $region27: #{tpu_custom_call.1} parent=1 // pred_check_branch
      %307 = sbr.rel (0) target = $region29
    $region28: #{tpu_custom_call.1} parent=1 // pred_region
      %308 = dma.done [#allocation4], 16
    $region29: #{tpu_custom_call.1} parent=1 // pred_fallthru
      _
    %309 = vsyncpa [#allocation3], 1
    %310 = vsyncpa [#allocation4], 1

</llo_original>
